<compile_context>
chip_gen: v7x
topology: tpu7x:2x2x1
jax: 0.10.0
libtpu: 0.0.40
codegen_flags: <defaults>
</compile_context>

<pallas_src>
import functools

import jax
import jax.numpy as jnp
from jax.experimental import pallas as pl
from jax.experimental.pallas import tpu as pltpu

ALPHA = 0.2     # LeakyReLU negative slope (module uses nn.LeakyReLU(0.2))
H1 = 128        # hidden sizes fixed by the module
H2 = 64


def _round_up(v, m):
    return ((v + m - 1) // m) * m


def _pick_row_tile(n8):
    """Row-tile choice: big tiles for throughput, bounded padding blow-up."""
    if n8 <= 2048:
        return n8                      # one resident tile, zero row padding
    for tm in (2048, 1024, 512, 256):  # >= 2 grid steps guaranteed (n8 > 2048)
        if _round_up(n8, tm) * 10 <= n8 * 11:   # padding overhead <= ~10%
            return tm
    return 256


def _pick_epilogue_dtype():
    """bf16 epilogue on chips with a bf16 VALU (v6e/v7x); f32 otherwise."""
    try:
        kind = jax.devices()[0].device_kind.lower()
    except Exception:
        return jnp.float32
    if ("v6" in kind) or ("v7" in kind):
        return jnp.bfloat16
    return jnp.float32


# ----------------------------- Pallas kernel ------------------------------- #

def _encoder_tab_kernel(x_ref, w1_ref, b1_ref, w2_ref, b2_ref,
                        w31_ref, b31_ref, w32_ref, b32_ref,
                        mu_ref, lv_ref, *, ep_dtype):
    bf = jnp.bfloat16

    # layer 1: (tm, D) @ (D, 128) -> f32 acc, bias + LeakyReLU in ep_dtype
    x = x_ref[...].astype(bf)
    h = jnp.dot(x, w1_ref[...], preferred_element_type=jnp.float32)
    h = h.astype(ep_dtype) + b1_ref[...].astype(ep_dtype)
    h = jnp.maximum(h, ALPHA * h)

    # layer 2: (tm, 128) @ (128, 64) -> f32 acc, bias + LeakyReLU in ep_dtype
    h = jnp.dot(h.astype(bf), w2_ref[...], preferred_element_type=jnp.float32)
    h = h.astype(ep_dtype) + b2_ref[...].astype(ep_dtype)
    h = jnp.maximum(h, ALPHA * h)
    h = h.astype(bf)

    # heads: two small dots written straight to the two outputs (f32)
    mu_ref[...] = (jnp.dot(h, w31_ref[...], preferred_element_type=jnp.float32)
                   + b31_ref[...])
    lv_ref[...] = (jnp.dot(h, w32_ref[...], preferred_element_type=jnp.float32)
                   + b32_ref[...])


# --------------------------- parameter creation ----------------------------- #

def init_params(key, input_dim, latent_dim=32):
    """PyTorch-layout params (Linear weight = (out, in)), kaiming fan_in init."""
    k1, k2, k3, k4, kb1, kb2, kb3, kb4 = jax.random.split(key, 8)

    def kaiming(k, fan_in, fan_out):
        std = (2.0 / fan_in) ** 0.5          # kaiming_normal_, a=0, fan_in
        return std * jax.random.normal(k, (fan_out, fan_in), jnp.float32)

    def bias(k, fan_in, fan_out):
        bound = 1.0 / (fan_in ** 0.5)        # default nn.Linear bias init
        return jax.random.uniform(k, (fan_out,), jnp.float32, -bound, bound)

    return dict(
        w1=kaiming(k1, input_dim, H1),   b1=bias(kb1, input_dim, H1),
        w2=kaiming(k2, H1, H2),          b2=bias(kb2, H1, H2),
        w31=kaiming(k3, H2, latent_dim), b31=bias(kb3, H2, latent_dim),
        w32=kaiming(k4, H2, latent_dim), b32=bias(kb4, H2, latent_dim),
    )


def pack_params(p):
    """Repack to matmul layout (in, out); bf16 weights, f32 biases. No padding."""
    bf = jnp.bfloat16
    return dict(
        w1m=p['w1'].T.astype(bf),   b1m=p['b1'].reshape(1, -1),
        w2m=p['w2'].T.astype(bf),   b2m=p['b2'].reshape(1, -1),
        w31m=p['w31'].T.astype(bf), b31m=p['b31'].reshape(1, -1),
        w32m=p['w32'].T.astype(bf), b32m=p['b32'].reshape(1, -1),
    )


# -------------------------------- forward ----------------------------------- #

def encoder_tab_forward(x, packed, latent_dim, ep_dtype=None):
    n, d = x.shape
    if ep_dtype is None:
        ep_dtype = _pick_epilogue_dtype()

    n8 = _round_up(max(n, 1), 8)
    tm = _pick_row_tile(n8)
    npad = _round_up(n8, tm)

    # Row-only padding; skipped entirely when n already matches.
    xp = x if npad == n else jnp.pad(x, ((0, npad - n), (0, 0)))

    L = packed['w31m'].shape[1]
    assert L == latent_dim

    kernel = functools.partial(_encoder_tab_kernel, ep_dtype=ep_dtype)

    flops = 2 * npad * (d * H1 + H1 * H2 + 2 * H2 * L)
    bytes_accessed = (npad * d * 4                           # x read (f32)
                      + 2 * npad * L * 4                     # mu/logvar writes
                      + 2 * (d * H1 + H1 * H2 + 2 * H2 * L)  # bf16 weights
                      + 4 * (H1 + H2 + 2 * L))               # f32 biases

    mu, logvar = pl.pallas_call(
        kernel,
        out_shape=(jax.ShapeDtypeStruct((npad, L), jnp.float32),
                   jax.ShapeDtypeStruct((npad, L), jnp.float32)),
        grid=(npad // tm,),
        in_specs=[
            pl.BlockSpec((tm, d),  lambda i: (i, 0)),   # x row tile (f32, native D)
            pl.BlockSpec((d, H1),  lambda i: (0, 0)),   # W1  (VMEM-resident)
            pl.BlockSpec((1, H1),  lambda i: (0, 0)),   # b1
            pl.BlockSpec((H1, H2), lambda i: (0, 0)),   # W2
            pl.BlockSpec((1, H2),  lambda i: (0, 0)),   # b2
            pl.BlockSpec((H2, L),  lambda i: (0, 0)),   # W3_1
            pl.BlockSpec((1, L),   lambda i: (0, 0)),   # b3_1
            pl.BlockSpec((H2, L),  lambda i: (0, 0)),   # W3_2
            pl.BlockSpec((1, L),   lambda i: (0, 0)),   # b3_2
        ],
        out_specs=(pl.BlockSpec((tm, L), lambda i: (i, 0)),   # mu
                   pl.BlockSpec((tm, L), lambda i: (i, 0))),  # logvar
        compiler_params=pltpu.CompilerParams(
            dimension_semantics=("parallel",),
            vmem_limit_bytes=32 * 1024 * 1024,
        ),
        cost_estimate=pl.CostEstimate(flops=flops, transcendentals=0,
                                      bytes_accessed=bytes_accessed),
    )(xp, packed['w1m'], packed['b1m'], packed['w2m'], packed['b2m'],
      packed['w31m'], packed['b31m'], packed['w32m'], packed['b32m'])

    if npad != n:
        mu, logvar = mu[:n], logvar[:n]
    z = mu    # eval-mode reparameterize (z = mu)
    return z, mu, logvar


# ------------------------- pure-JAX reference ------------------------------- #

def encoder_tab_ref(x, p, ep_dtype=jnp.float32):
    """Reference with the same bf16-operand / f32-accumulate / epilogue casts."""
    bf, f32 = jnp.bfloat16, jnp.float32
    h = jnp.dot(x.astype(bf), p['w1'].T.astype(bf), preferred_element_type=f32)
    h = h.astype(ep_dtype) + p['b1'].astype(ep_dtype)
    h = jnp.maximum(h, ALPHA * h)
    h = jnp.dot(h.astype(bf), p['w2'].T.astype(bf), preferred_element_type=f32)
    h = h.astype(ep_dtype) + p['b2'].astype(ep_dtype)
    h = jnp.maximum(h, ALPHA * h).astype(bf)
    mu = jnp.dot(h, p['w31'].T.astype(bf), preferred_element_type=f32) + p['b31']
    logvar = jnp.dot(h, p['w32'].T.astype(bf), preferred_element_type=f32) + p['b32']
    return mu, mu, logvar


# --------------------------------- driver ----------------------------------- #

if __name__ == "__main__":
    key = jax.random.PRNGKey(0)
    k_param, k_x = jax.random.split(key)

    batch, input_dim, latent_dim = 8, 48, 32

    params = init_params(k_param, input_dim, latent_dim)
    packed = pack_params(params)
    x = jax.random.normal(k_x, (batch, input_dim), jnp.float32)

    ep_dtype = _pick_epilogue_dtype()
    z, mu, logvar = encoder_tab_forward(x, packed, latent_dim, ep_dtype=ep_dtype)
    jax.block_until_ready((z, mu, logvar))

    # shape + numerics sanity vs a pure-JAX reference
    z_ref, mu_ref, lv_ref = encoder_tab_ref(x, params, ep_dtype=ep_dtype)
    assert z.shape == (batch, latent_dim)
    assert mu.shape == (batch, latent_dim)
    assert logvar.shape == (batch, latent_dim)
    assert bool(jnp.allclose(mu, mu_ref, atol=2e-2, rtol=2e-2))
    assert bool(jnp.allclose(logvar, lv_ref, atol=2e-2, rtol=2e-2))
    assert bool(jnp.allclose(z, mu))

    print("KERNEL_OK")
</pallas_src>

<mosaic_0001>
module attributes {stable_mosaic.version = 11 : i64} {
  func.func @_encoder_tab_kernel(%arg0: i32, %arg1: memref<8x48xf32, #tpu.memory_space<vmem>>, %arg2: memref<48x128xbf16, #tpu.memory_space<vmem>>, %arg3: memref<1x128xf32, #tpu.memory_space<vmem>>, %arg4: memref<128x64xbf16, #tpu.memory_space<vmem>>, %arg5: memref<1x64xf32, #tpu.memory_space<vmem>>, %arg6: memref<64x32xbf16, #tpu.memory_space<vmem>>, %arg7: memref<1x32xf32, #tpu.memory_space<vmem>>, %arg8: memref<64x32xbf16, #tpu.memory_space<vmem>>, %arg9: memref<1x32xf32, #tpu.memory_space<vmem>>, %arg10: memref<8x32xf32, #tpu.memory_space<vmem>>, %arg11: memref<8x32xf32, #tpu.memory_space<vmem>>) attributes {dimension_semantics = [#tpu.dimension_semantics<parallel>], iteration_bounds = array<i64: 1>, scalar_prefetch = 0 : i64, scratch_operands = 0 : i64, tpu.core_type = #tpu.core_type<tc>, window_params = [{transform_indices = @transform_0, window_bounds = array<i64: 8, 48>}, {pipeline_mode = #tpu.pipeline_mode<synchronous>, transform_indices = @transform_1, window_bounds = array<i64: 48, 128>}, {pipeline_mode = #tpu.pipeline_mode<synchronous>, transform_indices = @transform_2, window_bounds = array<i64: 1, 128>}, {pipeline_mode = #tpu.pipeline_mode<synchronous>, transform_indices = @transform_3, window_bounds = array<i64: 128, 64>}, {pipeline_mode = #tpu.pipeline_mode<synchronous>, transform_indices = @transform_4, window_bounds = array<i64: 1, 64>}, {pipeline_mode = #tpu.pipeline_mode<synchronous>, transform_indices = @transform_5, window_bounds = array<i64: 64, 32>}, {pipeline_mode = #tpu.pipeline_mode<synchronous>, transform_indices = @transform_6, window_bounds = array<i64: 1, 32>}, {pipeline_mode = #tpu.pipeline_mode<synchronous>, transform_indices = @transform_7, window_bounds = array<i64: 64, 32>}, {pipeline_mode = #tpu.pipeline_mode<synchronous>, transform_indices = @transform_8, window_bounds = array<i64: 1, 32>}, {transform_indices = @transform_9, window_bounds = array<i64: 8, 32>}, {transform_indices = @transform_10, window_bounds = array<i64: 8, 32>}]} {
    %c0 = arith.constant 0 : index
    %c0_0 = arith.constant 0 : index
    %0 = vector.load %arg1[%c0, %c0_0] : memref<8x48xf32, #tpu.memory_space<vmem>>, vector<8x48xf32>
    %1 = arith.truncf %0 : vector<8x48xf32> to vector<8x48xbf16>
    %c0_1 = arith.constant 0 : index
    %c0_2 = arith.constant 0 : index
    %2 = vector.load %arg2[%c0_1, %c0_2] : memref<48x128xbf16, #tpu.memory_space<vmem>>, vector<48x128xbf16>
    %cst = arith.constant dense<0.000000e+00> : vector<8x128xf32>
    %3 = tpu.matmul %1, %2, %cst {dimension_numbers = #tpu.dot_dimension_numbers<[1], [0], [0], [1], [0, 0, 1, 1], [], []>} : vector<8x48xbf16>, vector<48x128xbf16>, vector<8x128xf32> -> vector<8x128xf32>
    %c0_3 = arith.constant 0 : index
    %c0_4 = arith.constant 0 : index
    %4 = vector.load %arg3[%c0_3, %c0_4] : memref<1x128xf32, #tpu.memory_space<vmem>>, vector<1x128xf32>
    %5 = vector.broadcast %4 : vector<1x128xf32> to vector<8x128xf32>
    %6 = arith.addf %3, %5 : vector<8x128xf32>
    %cst_5 = arith.constant 2.000000e-01 : f32
    %7 = vector.broadcast %cst_5 : f32 to vector<8x128xf32>
    %8 = arith.mulf %7, %6 : vector<8x128xf32>
    %9 = arith.maximumf %6, %8 : vector<8x128xf32>
    %10 = arith.truncf %9 : vector<8x128xf32> to vector<8x128xbf16>
    %c0_6 = arith.constant 0 : index
    %c0_7 = arith.constant 0 : index
    %11 = vector.load %arg4[%c0_6, %c0_7] : memref<128x64xbf16, #tpu.memory_space<vmem>>, vector<128x64xbf16>
    %cst_8 = arith.constant dense<0.000000e+00> : vector<8x64xf32>
    %12 = tpu.matmul %10, %11, %cst_8 {dimension_numbers = #tpu.dot_dimension_numbers<[1], [0], [0], [1], [0, 0, 1, 1], [], []>} : vector<8x128xbf16>, vector<128x64xbf16>, vector<8x64xf32> -> vector<8x64xf32>
    %c0_9 = arith.constant 0 : index
    %c0_10 = arith.constant 0 : index
    %13 = vector.load %arg5[%c0_9, %c0_10] : memref<1x64xf32, #tpu.memory_space<vmem>>, vector<1x64xf32>
    %14 = vector.broadcast %13 : vector<1x64xf32> to vector<8x64xf32>
    %15 = arith.addf %12, %14 : vector<8x64xf32>
    %cst_11 = arith.constant 2.000000e-01 : f32
    %16 = vector.broadcast %cst_11 : f32 to vector<8x64xf32>
    %17 = arith.mulf %16, %15 : vector<8x64xf32>
    %18 = arith.maximumf %15, %17 : vector<8x64xf32>
    %19 = arith.truncf %18 : vector<8x64xf32> to vector<8x64xbf16>
    %c0_12 = arith.constant 0 : index
    %c0_13 = arith.constant 0 : index
    %20 = vector.load %arg6[%c0_12, %c0_13] : memref<64x32xbf16, #tpu.memory_space<vmem>>, vector<64x32xbf16>
    %cst_14 = arith.constant dense<0.000000e+00> : vector<8x32xf32>
    %21 = tpu.matmul %19, %20, %cst_14 {dimension_numbers = #tpu.dot_dimension_numbers<[1], [0], [0], [1], [0, 0, 1, 1], [], []>} : vector<8x64xbf16>, vector<64x32xbf16>, vector<8x32xf32> -> vector<8x32xf32>
    %c0_15 = arith.constant 0 : index
    %c0_16 = arith.constant 0 : index
    %22 = vector.load %arg7[%c0_15, %c0_16] : memref<1x32xf32, #tpu.memory_space<vmem>>, vector<1x32xf32>
    %23 = vector.broadcast %22 : vector<1x32xf32> to vector<8x32xf32>
    %24 = arith.addf %21, %23 : vector<8x32xf32>
    %c0_17 = arith.constant 0 : index
    %c0_18 = arith.constant 0 : index
    %25 = vector.load %arg10[%c0_17, %c0_18] : memref<8x32xf32, #tpu.memory_space<vmem>>, vector<8x32xf32>
    tpu.vector_store %arg10[%c0_17, %c0_18], %24 {strides = array<i32>} : memref<8x32xf32, #tpu.memory_space<vmem>>, vector<8x32xf32>,
    %c0_19 = arith.constant 0 : index
    %c0_20 = arith.constant 0 : index
    %26 = vector.load %arg8[%c0_19, %c0_20] : memref<64x32xbf16, #tpu.memory_space<vmem>>, vector<64x32xbf16>
    %cst_21 = arith.constant dense<0.000000e+00> : vector<8x32xf32>
    %27 = tpu.matmul %19, %26, %cst_21 {dimension_numbers = #tpu.dot_dimension_numbers<[1], [0], [0], [1], [0, 0, 1, 1], [], []>} : vector<8x64xbf16>, vector<64x32xbf16>, vector<8x32xf32> -> vector<8x32xf32>
    %c0_22 = arith.constant 0 : index
    %c0_23 = arith.constant 0 : index
    %28 = vector.load %arg9[%c0_22, %c0_23] : memref<1x32xf32, #tpu.memory_space<vmem>>, vector<1x32xf32>
    %29 = vector.broadcast %28 : vector<1x32xf32> to vector<8x32xf32>
    %30 = arith.addf %27, %29 : vector<8x32xf32>
    %c0_24 = arith.constant 0 : index
    %c0_25 = arith.constant 0 : index
    %31 = vector.load %arg11[%c0_24, %c0_25] : memref<8x32xf32, #tpu.memory_space<vmem>>, vector<8x32xf32>
    tpu.vector_store %arg11[%c0_24, %c0_25], %30 {strides = array<i32>} : memref<8x32xf32, #tpu.memory_space<vmem>>, vector<8x32xf32>,
    return
  }
  func.func @transform_0(%arg0: i32) -> (i32, i32) {
    %c0_i32 = arith.constant 0 : i32
    %c0_i32_0 = arith.constant 0 : i32
    return %arg0, %c0_i32 : i32, i32
  }
  func.func @transform_1(%arg0: i32) -> (i32, i32) {
    %c0_i32 = arith.constant 0 : i32
    %c0_i32_0 = arith.constant 0 : i32
    %c0_i32_1 = arith.constant 0 : i32
    return %c0_i32, %c0_i32_0 : i32, i32
  }
  func.func @transform_2(%arg0: i32) -> (i32, i32) {
    %c0_i32 = arith.constant 0 : i32
    %c0_i32_0 = arith.constant 0 : i32
    %c0_i32_1 = arith.constant 0 : i32
    return %c0_i32, %c0_i32_0 : i32, i32
  }
  func.func @transform_3(%arg0: i32) -> (i32, i32) {
    %c0_i32 = arith.constant 0 : i32
    %c0_i32_0 = arith.constant 0 : i32
    %c0_i32_1 = arith.constant 0 : i32
    return %c0_i32, %c0_i32_0 : i32, i32
  }
  func.func @transform_4(%arg0: i32) -> (i32, i32) {
    %c0_i32 = arith.constant 0 : i32
    %c0_i32_0 = arith.constant 0 : i32
    %c0_i32_1 = arith.constant 0 : i32
    return %c0_i32, %c0_i32_0 : i32, i32
  }
  func.func @transform_5(%arg0: i32) -> (i32, i32) {
    %c0_i32 = arith.constant 0 : i32
    %c0_i32_0 = arith.constant 0 : i32
    %c0_i32_1 = arith.constant 0 : i32
    return %c0_i32, %c0_i32_0 : i32, i32
  }
  func.func @transform_6(%arg0: i32) -> (i32, i32) {
    %c0_i32 = arith.constant 0 : i32
    %c0_i32_0 = arith.constant 0 : i32
    %c0_i32_1 = arith.constant 0 : i32
    return %c0_i32, %c0_i32_0 : i32, i32
  }
  func.func @transform_7(%arg0: i32) -> (i32, i32) {
    %c0_i32 = arith.constant 0 : i32
    %c0_i32_0 = arith.constant 0 : i32
    %c0_i32_1 = arith.constant 0 : i32
    return %c0_i32, %c0_i32_0 : i32, i32
  }
  func.func @transform_8(%arg0: i32) -> (i32, i32) {
    %c0_i32 = arith.constant 0 : i32
    %c0_i32_0 = arith.constant 0 : i32
    %c0_i32_1 = arith.constant 0 : i32
    return %c0_i32, %c0_i32_0 : i32, i32
  }
  func.func @transform_9(%arg0: i32) -> (i32, i32) {
    %c0_i32 = arith.constant 0 : i32
    %c0_i32_0 = arith.constant 0 : i32
    return %arg0, %c0_i32 : i32, i32
  }
  func.func @transform_10(%arg0: i32) -> (i32, i32) {
    %c0_i32 = arith.constant 0 : i32
    %c0_i32_0 = arith.constant 0 : i32
    return %arg0, %c0_i32 : i32, i32
  }
}

</mosaic_0001>

<llo_original>
// kernel: tpu_custom_call.1
$region0: #{tpu_custom_call.1}
  #allocation0 [shape = 'u32[]', space=smem, size = 0x4, offset = 0x4, fixed_abs, tag = 'smem constant byte address 0x4 - core index']
  #allocation1 [shape = 'u32[144,128]{1,0:T(1,128)}', space=vmem, size = 0x12000, scoped, tag = 'internal scratch']
  %s0 = inlined_call_operand.vmem [shape: f32[8,48], index: 0, kind: input, shape index: {}]
  %s1 = inlined_call_operand.vmem [shape: bf16[48,128], index: 1, kind: input, shape index: {}]
  %s2 = inlined_call_operand.vmem [shape: f32[1,128], index: 2, kind: input, shape index: {}]
  %s3 = inlined_call_operand.vmem [shape: bf16[128,64], index: 3, kind: input, shape index: {}]
  %s4 = inlined_call_operand.vmem [shape: f32[1,64], index: 4, kind: input, shape index: {}]
  %s5 = inlined_call_operand.vmem [shape: bf16[64,32], index: 5, kind: input, shape index: {}]
  %s6 = inlined_call_operand.vmem [shape: f32[1,32], index: 6, kind: input, shape index: {}]
  %s7 = inlined_call_operand.vmem [shape: bf16[64,32], index: 7, kind: input, shape index: {}]
  %s8 = inlined_call_operand.vmem [shape: f32[1,32], index: 8, kind: input, shape index: {}]
  %s9 = inlined_call_operand.hbm [shape: f32[8,32], index: 9, kind: output, shape index: {0}]
  %s10 = inlined_call_operand.hbm [shape: f32[8,32], index: 10, kind: output, shape index: {1}]
  %11 = xla_tuple %s9, %s10
  %s12 = sld [smem:[#allocation0]]
  $region54: #{tpu_custom_call.1} parent=0
    _
  %s14 = ssub.s32 1, %s12
  %s15 = scalar_select 0, %s14, %s12
  $region1: #{tpu_custom_call.1} parent=0
    #allocation2 [shape = 'u8[4096]{0}', space=vmem, size = 0x1000, scoped, tag = 'output window, operand 0, single buffered']
    #allocation3 [shape = 's32[1]{0}', space=sflag, size = 0x4, scoped, tag = 'scoped memory for tpu_custom_call.1']
    #allocation4 [shape = 'u8[4096]{0}', space=vmem, size = 0x1000, scoped, tag = 'output window, operand 1, single buffered']
    #allocation5 [shape = 's32[1]{0}', space=sflag, size = 0x4, scoped, tag = 'scoped memory for tpu_custom_call.1']
    %16 = vsyncpa [#allocation3], 0
    %17 = vsyncpa [#allocation5], 0
    // Predicated region
    $region2: #{tpu_custom_call.1} parent=1 // pred_check
      _
    $region3: #{tpu_custom_call.1} parent=1 // pred_check_branch
      %19 = sbr.rel (0) target = $region5
    $region4: #{tpu_custom_call.1} parent=1 // pred_region
      _
    $region5: #{tpu_custom_call.1} parent=1 // pred_fallthru
      _
    // Predicated region
    $region6: #{tpu_custom_call.1} parent=1 // pred_check
      _
    $region7: #{tpu_custom_call.1} parent=1 // pred_check_branch
      %21 = sbr.rel (0) target = $region9
    $region8: #{tpu_custom_call.1} parent=1 // pred_region
      _
    $region9: #{tpu_custom_call.1} parent=1 // pred_fallthru
      _
    // Predicated region
    $region10: #{tpu_custom_call.1} parent=1 // pred_check
      _
    $region11: #{tpu_custom_call.1} parent=1 // pred_check_branch
      %23 = sbr.rel (0) target = $region13
    $region12: #{tpu_custom_call.1} parent=1 // pred_region
      _
    $region13: #{tpu_custom_call.1} parent=1 // pred_fallthru
      _
    // Predicated region
    $region14: #{tpu_custom_call.1} parent=1 // pred_check
      _
    $region15: #{tpu_custom_call.1} parent=1 // pred_check_branch
      %25 = sbr.rel (0) target = $region17
    $region16: #{tpu_custom_call.1} parent=1 // pred_region
      _
    $region17: #{tpu_custom_call.1} parent=1 // pred_fallthru
      _
    // Predicated region
    $region18: #{tpu_custom_call.1} parent=1 // pred_check
      _
    $region19: #{tpu_custom_call.1} parent=1 // pred_check_branch
      %27 = sbr.rel (0) target = $region21
    $region20: #{tpu_custom_call.1} parent=1 // pred_region
      _
    $region21: #{tpu_custom_call.1} parent=1 // pred_fallthru
      _
    // Predicated region
    $region22: #{tpu_custom_call.1} parent=1 // pred_check
      _
    $region23: #{tpu_custom_call.1} parent=1 // pred_check_branch
      %29 = sbr.rel (0) target = $region25
    $region24: #{tpu_custom_call.1} parent=1 // pred_region
      _
    $region25: #{tpu_custom_call.1} parent=1 // pred_fallthru
      _
    // Predicated region
    $region26: #{tpu_custom_call.1} parent=1 // pred_check
      _
    $region27: #{tpu_custom_call.1} parent=1 // pred_check_branch
      %31 = sbr.rel (0) target = $region29
    $region28: #{tpu_custom_call.1} parent=1 // pred_region
      _
    $region29: #{tpu_custom_call.1} parent=1 // pred_fallthru
      _
    // Predicated region
    $region30: #{tpu_custom_call.1} parent=1 // pred_check
      _
    $region31: #{tpu_custom_call.1} parent=1 // pred_check_branch
      %33 = sbr.rel (0) target = $region33
    $region32: #{tpu_custom_call.1} parent=1 // pred_region
      _
    $region33: #{tpu_custom_call.1} parent=1 // pred_fallthru
      _
    // Predicated region
    $region34: #{tpu_custom_call.1} parent=1 // pred_check
      _
    $region35: #{tpu_custom_call.1} parent=1 // pred_check_branch
      %35 = sbr.rel (0) target = $region37
    $region36: #{tpu_custom_call.1} parent=1 // pred_region
      _
    $region37: #{tpu_custom_call.1} parent=1 // pred_fallthru
      _
    %v37 = vld [vmem:[%s0] sm:$0xff]
    %v38 = vpack.c.bf16 %v37, %v37
    %v39 = vld [vmem:[%s1] sm:$0xf]
    %v40 = vld [vmem:[%s1 + $0x4] sm:$0xf]
    %v41 = vld [vmem:[%s1 + $0x8] sm:$0xf]
    %v42 = vld [vmem:[%s1 + $0xc] sm:$0xf]
    %v43 = vld [vmem:[%s1 + $0x10] sm:$0xf]
    %v44 = vld [vmem:[%s1 + $0x14] sm:$0xf]
    %v45 = vld [vmem:[%s2] sm:$0x1]
    %v47 = vlaneseq
    %v48 = vshrl.u32 %v47, 7
    %v49 = vsub.s32 0, %v48
    %v50 = vrot.slane %v45, %v49
    %v58 = vunpack.c.l.b16 %v39
    %v59 = vunpack.c.l.b16 %v40
    %v60 = vunpack.c.l.b16 %v41
    %v61 = vunpack.c.l.b16 %v42
    %v62 = vunpack.c.l.b16 %v43
    %v63 = vunpack.c.l.b16 %v44
    %v64 = vpack.c.b16 %v59, %v58
    %v65 = vpack.c.b16 %v61, %v60
    %v66 = vpack.c.b16 %v63, %v62
    %vm70 = vcmask 392192
    %v72 = vsel %vm70, %v38, 0
    %74 = vmatprep.subr.bf16.mxu0 0
    %75 = vmatpush1.bf16.msra.mxu0 %v64
    %76 = vmatprep.subr.bf16.mxu0 0
    %77 = vmatpush1.bf16.msra.mxu0 %v65
    %78 = vmatprep.subr.bf16.mxu0 0
    %79 = vmatpush1.bf16.msra.mxu0 %v66
    %80 = vmatprep.subr.bf16.mxu0 0
    %81 = vmatpush1.bf16.msra.mxu0 0
    %82 = vmatprep.subr.bf16.mxu0 0
    %83 = vmatpush1.bf16.msra.mxu0 0
    %84 = vmatprep.subr.bf16.mxu0 0
    %85 = vmatpush1.bf16.msra.mxu0 0
    %86 = vmatprep.subr.bf16.mxu0 0
    %87 = vmatpush1.bf16.msra.mxu0 0
    %88 = vmatprep.subr.bf16.mxu0 0
    %89 = vmatpush1.bf16.msra.mxu0 0
    %90 = vmatprep.subr.bf16.mxu0 0
    %91 = vmatpush1.bf16.msra.mxu0 0
    %92 = vmatprep.subr.bf16.mxu0 0
    %93 = vmatpush1.bf16.msra.mxu0 0
    %94 = vmatprep.subr.bf16.mxu0 0
    %95 = vmatpush1.bf16.msra.mxu0 0
    %96 = vmatprep.subr.bf16.mxu0 0
    %97 = vmatpush1.bf16.msra.mxu0 0
    %98 = vmatprep.subr.bf16.mxu0 0
    %99 = vmatpush1.bf16.msra.mxu0 0
    %100 = vmatprep.subr.bf16.mxu0 0
    %101 = vmatpush1.bf16.msra.mxu0 0
    %102 = vmatprep.subr.bf16.mxu0 0
    %103 = vmatpush1.bf16.msra.mxu0 0
    %104 = vmatprep.subr.bf16.mxu0 0
    %105 = vmatpush1.bf16.msra.mxu0 0
    %106 = vmatprep.mubr.bf16.mxu0 0
    %107 = vmatmul.mubr.bf16.gmra.mrb[0].mxu0 %v72
    %v108 = vpop.f32.mrb[0].mxu0
    %v109 = vadd.f32 %v50, %v108
    %v110 = vpop.f32.mrb[0].mxu0
    %v111 = vpop.f32.mrb[0].mxu0
    %v112 = vpop.f32.mrb[0].mxu0
    %113 = vdwg.mxu0
    %v114 = vmul.f32 %v109, 0.2
    %v115 = vmax.f32 %v109, %v114
    %v116 = vpack.c.bf16 %v115, %v115
    %v117 = vld [vmem:[%s3] sm:$0xf]
    %v118 = vld [vmem:[%s3 + $0x4] sm:$0xf]
    %v119 = vld [vmem:[%s3 + $0x8] sm:$0xf]
    %v120 = vld [vmem:[%s3 + $0xc] sm:$0xf]
    %v121 = vld [vmem:[%s3 + $0x10] sm:$0xf]
    %v122 = vld [vmem:[%s3 + $0x14] sm:$0xf]
    %v123 = vld [vmem:[%s3 + $0x18] sm:$0xf]
    %v124 = vld [vmem:[%s3 + $0x1c] sm:$0xf]
    %v125 = vld [vmem:[%s3 + $0x20] sm:$0xf]
    %v126 = vld [vmem:[%s3 + $0x24] sm:$0xf]
    %v127 = vld [vmem:[%s3 + $0x28] sm:$0xf]
    %v128 = vld [vmem:[%s3 + $0x2c] sm:$0xf]
    %v129 = vld [vmem:[%s3 + $0x30] sm:$0xf]
    %v130 = vld [vmem:[%s3 + $0x34] sm:$0xf]
    %v131 = vld [vmem:[%s3 + $0x38] sm:$0xf]
    %v132 = vld [vmem:[%s3 + $0x3c] sm:$0xf]
    %v133 = vld [vmem:[%s4] sm:$0x1]
    %v135 = vlaneseq
    %v136 = vshrl.u32 %v135, 7
    %v137 = vsub.s32 0, %v136
    %v138 = vrot.slane %v133, %v137
    %v156 = vunpack.c.l.b16 %v117
    %v157 = vunpack.c.l.b16 %v118
    %v158 = vunpack.c.l.b16 %v119
    %v159 = vunpack.c.l.b16 %v120
    %v160 = vunpack.c.l.b16 %v121
    %v161 = vunpack.c.l.b16 %v122
    %v162 = vunpack.c.l.b16 %v123
    %v163 = vunpack.c.l.b16 %v124
    %v164 = vunpack.c.l.b16 %v125
    %v165 = vunpack.c.l.b16 %v126
    %v166 = vunpack.c.l.b16 %v127
    %v167 = vunpack.c.l.b16 %v128
    %v168 = vunpack.c.l.b16 %v129
    %v169 = vunpack.c.l.b16 %v130
    %v170 = vunpack.c.l.b16 %v131
    %v171 = vunpack.c.l.b16 %v132
    %v172 = vpack.c.b16 %v157, %v156
    %v173 = vpack.c.b16 %v159, %v158
    %v174 = vpack.c.b16 %v161, %v160
    %v175 = vpack.c.b16 %v163, %v162
    %v176 = vpack.c.b16 %v165, %v164
    %v177 = vpack.c.b16 %v167, %v166
    %v178 = vpack.c.b16 %v169, %v168
    %v179 = vpack.c.b16 %v171, %v170
    %188 = vmatprep.subr.bf16.mxu0 0
    %189 = vmatpush1.bf16.msra.mxu0 %v172
    %190 = vmatprep.subr.bf16.mxu0 0
    %191 = vmatpush1.bf16.msra.mxu0 %v173
    %192 = vmatprep.subr.bf16.mxu0 0
    %193 = vmatpush1.bf16.msra.mxu0 %v174
    %194 = vmatprep.subr.bf16.mxu0 0
    %195 = vmatpush1.bf16.msra.mxu0 %v175
    %196 = vmatprep.subr.bf16.mxu0 0
    %197 = vmatpush1.bf16.msra.mxu0 %v176
    %198 = vmatprep.subr.bf16.mxu0 0
    %199 = vmatpush1.bf16.msra.mxu0 %v177
    %200 = vmatprep.subr.bf16.mxu0 0
    %201 = vmatpush1.bf16.msra.mxu0 %v178
    %202 = vmatprep.subr.bf16.mxu0 0
    %203 = vmatpush1.bf16.msra.mxu0 %v179
    %204 = vmatprep.subr.bf16.mxu0 0
    %205 = vmatpush1.bf16.msra.mxu0 0
    %206 = vmatprep.subr.bf16.mxu0 0
    %207 = vmatpush1.bf16.msra.mxu0 0
    %208 = vmatprep.subr.bf16.mxu0 0
    %209 = vmatpush1.bf16.msra.mxu0 0
    %210 = vmatprep.subr.bf16.mxu0 0
    %211 = vmatpush1.bf16.msra.mxu0 0
    %212 = vmatprep.subr.bf16.mxu0 0
    %213 = vmatpush1.bf16.msra.mxu0 0
    %214 = vmatprep.subr.bf16.mxu0 0
    %215 = vmatpush1.bf16.msra.mxu0 0
    %216 = vmatprep.subr.bf16.mxu0 0
    %217 = vmatpush1.bf16.msra.mxu0 0
    %218 = vmatprep.subr.bf16.mxu0 0
    %219 = vmatpush1.bf16.msra.mxu0 0
    %220 = vmatprep.mubr.bf16.mxu0 0
    %221 = vmatmul.mubr.bf16.gmra.mrb[0].mxu0 %v116
    %v222 = vpop.f32.mrb[0].mxu0
    %v223 = vadd.f32 %v138, %v222
    %v224 = vpop.f32.mrb[0].mxu0
    %v225 = vpop.f32.mrb[0].mxu0
    %v226 = vpop.f32.mrb[0].mxu0
    %227 = vdwg.mxu0
    %v228 = vmul.f32 %v223, 0.2
    %v229 = vmax.f32 %v223, %v228
    %v230 = vpack.c.bf16 %v229, %v229
    %v231 = vld [vmem:[%s5] sm:$0xf]
    %v232 = vld [vmem:[%s5 + $0x4] sm:$0xf]
    %v233 = vld [vmem:[%s5 + $0x8] sm:$0xf]
    %v234 = vld [vmem:[%s5 + $0xc] sm:$0xf]
    %v235 = vld [vmem:[%s5 + $0x10] sm:$0xf]
    %v236 = vld [vmem:[%s5 + $0x14] sm:$0xf]
    %v237 = vld [vmem:[%s5 + $0x18] sm:$0xf]
    %v238 = vld [vmem:[%s5 + $0x1c] sm:$0xf]
    %v239 = vld [vmem:[%s6] sm:$0x1]
    %v241 = vlaneseq
    %v242 = vshrl.u32 %v241, 7
    %v243 = vsub.s32 0, %v242
    %v244 = vrot.slane %v239, %v243
    %v254 = vunpack.c.l.b16 %v231
    %v255 = vunpack.c.l.b16 %v232
    %v256 = vunpack.c.l.b16 %v233
    %v257 = vunpack.c.l.b16 %v234
    %v258 = vunpack.c.l.b16 %v235
    %v259 = vunpack.c.l.b16 %v236
    %v260 = vunpack.c.l.b16 %v237
    %v261 = vunpack.c.l.b16 %v238
    %v262 = vpack.c.b16 %v255, %v254
    %v263 = vpack.c.b16 %v257, %v256
    %v264 = vpack.c.b16 %v259, %v258
    %v265 = vpack.c.b16 %v261, %v260
    %vm270 = vcmask 523264
    %v272 = vsel %vm270, %v230, 0
    %274 = vmatprep.subr.bf16.mxu0 0
    %275 = vmatpush1.bf16.msra.mxu0 %v262
    %276 = vmatprep.subr.bf16.mxu0 0
    %277 = vmatpush1.bf16.msra.mxu0 %v263
    %278 = vmatprep.subr.bf16.mxu0 0
    %279 = vmatpush1.bf16.msra.mxu0 %v264
    %280 = vmatprep.subr.bf16.mxu0 0
    %281 = vmatpush1.bf16.msra.mxu0 %v265
    %282 = vmatprep.subr.bf16.mxu0 0
    %283 = vmatpush1.bf16.msra.mxu0 0
    %284 = vmatprep.subr.bf16.mxu0 0
    %285 = vmatpush1.bf16.msra.mxu0 0
    %286 = vmatprep.subr.bf16.mxu0 0
    %287 = vmatpush1.bf16.msra.mxu0 0
    %288 = vmatprep.subr.bf16.mxu0 0
    %289 = vmatpush1.bf16.msra.mxu0 0
    %290 = vmatprep.subr.bf16.mxu0 0
    %291 = vmatpush1.bf16.msra.mxu0 0
    %292 = vmatprep.subr.bf16.mxu0 0
    %293 = vmatpush1.bf16.msra.mxu0 0
    %294 = vmatprep.subr.bf16.mxu0 0
    %295 = vmatpush1.bf16.msra.mxu0 0
    %296 = vmatprep.subr.bf16.mxu0 0
    %297 = vmatpush1.bf16.msra.mxu0 0
    %298 = vmatprep.subr.bf16.mxu0 0
    %299 = vmatpush1.bf16.msra.mxu0 0
    %300 = vmatprep.subr.bf16.mxu0 0
    %301 = vmatpush1.bf16.msra.mxu0 0
    %302 = vmatprep.subr.bf16.mxu0 0
    %303 = vmatpush1.bf16.msra.mxu0 0
    %304 = vmatprep.subr.bf16.mxu0 0
    %305 = vmatpush1.bf16.msra.mxu0 0
    %306 = vmatprep.mubr.bf16.mxu0 0
    %307 = vmatmul.mubr.bf16.gmra.mrb[0].mxu0 %v272
    %v308 = vpop.f32.mrb[0].mxu0
    %v309 = vadd.f32 %v244, %v308
    %v310 = vpop.f32.mrb[0].mxu0
    %v311 = vpop.f32.mrb[0].mxu0
    %v312 = vpop.f32.mrb[0].mxu0
    %313 = vdwg.mxu0
    %vm314 = vcmask 261120
    %315 = vst.msk [vmem:[#allocation2] sm:$0xff] %vm314, %v309
    %v316 = vld [vmem:[%s7] sm:$0xf]
    %v317 = vld [vmem:[%s7 + $0x4] sm:$0xf]
    %v318 = vld [vmem:[%s7 + $0x8] sm:$0xf]
    %v319 = vld [vmem:[%s7 + $0xc] sm:$0xf]
    %v320 = vld [vmem:[%s7 + $0x10] sm:$0xf]
    %v321 = vld [vmem:[%s7 + $0x14] sm:$0xf]
    %v322 = vld [vmem:[%s7 + $0x18] sm:$0xf]
    %v323 = vld [vmem:[%s7 + $0x1c] sm:$0xf]
    %v324 = vld [vmem:[%s8] sm:$0x1]
    %v326 = vlaneseq
    %v327 = vshrl.u32 %v326, 7
    %v328 = vsub.s32 0, %v327
    %v329 = vrot.slane %v324, %v328
    %v339 = vunpack.c.l.b16 %v316
    %v340 = vunpack.c.l.b16 %v317
    %v341 = vunpack.c.l.b16 %v318
    %v342 = vunpack.c.l.b16 %v319
    %v343 = vunpack.c.l.b16 %v320
    %v344 = vunpack.c.l.b16 %v321
    %v345 = vunpack.c.l.b16 %v322
    %v346 = vunpack.c.l.b16 %v323
    %v347 = vpack.c.b16 %v340, %v339
    %v348 = vpack.c.b16 %v342, %v341
    %v349 = vpack.c.b16 %v344, %v343
    %v350 = vpack.c.b16 %v346, %v345
    %355 = vmatprep.subr.bf16.mxu0 0
    %356 = vmatpush1.bf16.msra.mxu0 %v347
    %357 = vmatprep.subr.bf16.mxu0 0
    %358 = vmatpush1.bf16.msra.mxu0 %v348
    %359 = vmatprep.subr.bf16.mxu0 0
    %360 = vmatpush1.bf16.msra.mxu0 %v349
    %361 = vmatprep.subr.bf16.mxu0 0
    %362 = vmatpush1.bf16.msra.mxu0 %v350
    %363 = vmatprep.subr.bf16.mxu0 0
    %364 = vmatpush1.bf16.msra.mxu0 0
    %365 = vmatprep.subr.bf16.mxu0 0
    %366 = vmatpush1.bf16.msra.mxu0 0
    %367 = vmatprep.subr.bf16.mxu0 0
    %368 = vmatpush1.bf16.msra.mxu0 0
    %369 = vmatprep.subr.bf16.mxu0 0
    %370 = vmatpush1.bf16.msra.mxu0 0
    %371 = vmatprep.subr.bf16.mxu0 0
    %372 = vmatpush1.bf16.msra.mxu0 0
    %373 = vmatprep.subr.bf16.mxu0 0
    %374 = vmatpush1.bf16.msra.mxu0 0
    %375 = vmatprep.subr.bf16.mxu0 0
    %376 = vmatpush1.bf16.msra.mxu0 0
    %377 = vmatprep.subr.bf16.mxu0 0
    %378 = vmatpush1.bf16.msra.mxu0 0
    %379 = vmatprep.subr.bf16.mxu0 0
    %380 = vmatpush1.bf16.msra.mxu0 0
    %381 = vmatprep.subr.bf16.mxu0 0
    %382 = vmatpush1.bf16.msra.mxu0 0
    %383 = vmatprep.subr.bf16.mxu0 0
    %384 = vmatpush1.bf16.msra.mxu0 0
    %385 = vmatprep.subr.bf16.mxu0 0
    %386 = vmatpush1.bf16.msra.mxu0 0
    %387 = vmatprep.mubr.bf16.mxu0 0
    %388 = vmatmul.mubr.bf16.gmra.mrb[0].mxu0 %v272
    %v389 = vpop.f32.mrb[0].mxu0
    %v390 = vadd.f32 %v329, %v389
    %v391 = vpop.f32.mrb[0].mxu0
    %v392 = vpop.f32.mrb[0].mxu0
    %v393 = vpop.f32.mrb[0].mxu0
    %394 = vdwg.mxu0
    %395 = vst.msk [vmem:[#allocation4] sm:$0xff] %vm314, %v390
    // Predicated region
    $region38: #{tpu_custom_call.1} parent=1 // pred_check
      _
    $region39: #{tpu_custom_call.1} parent=1 // pred_check_branch
      %397 = sbr.rel (0) target = $region41
    $region40: #{tpu_custom_call.1} parent=1 // pred_region
      %s399 = ssub.s32 128, 128
      %400 = vsyncadd [#allocation3], %s399
      %s402 = sshll.u32 [#allocation2], 4
      %s403 = int_to_ptr.vmem [resolvable:$true] %s402
      %405 = dma.vmem_to_hbm [thread:$0]  %s403, 128, %s9, [#allocation3]
    $region41: #{tpu_custom_call.1} parent=1 // pred_fallthru
      _
    // Predicated region
    $region42: #{tpu_custom_call.1} parent=1 // pred_check
      _
    $region43: #{tpu_custom_call.1} parent=1 // pred_check_branch
      %407 = sbr.rel (0) target = $region45
    $region44: #{tpu_custom_call.1} parent=1 // pred_region
      %s409 = ssub.s32 128, 128
      %410 = vsyncadd [#allocation5], %s409
      %s412 = sshll.u32 [#allocation4], 4
      %s413 = int_to_ptr.vmem [resolvable:$true] %s412
      %415 = dma.vmem_to_hbm [thread:$0]  %s413, 128, %s10, [#allocation5]
    $region45: #{tpu_custom_call.1} parent=1 // pred_fallthru
      _
    // Predicated region
    $region46: #{tpu_custom_call.1} parent=1 // pred_check
      _
    $region47: #{tpu_custom_call.1} parent=1 // pred_check_branch
      %417 = sbr.rel (0) target = $region49
    $region48: #{tpu_custom_call.1} parent=1 // pred_region
      %418 = dma.done [#allocation3], 128
    $region49: #{tpu_custom_call.1} parent=1 // pred_fallthru
      _
    // Predicated region
    $region50: #{tpu_custom_call.1} parent=1 // pred_check
      _
    $region51: #{tpu_custom_call.1} parent=1 // pred_check_branch
      %420 = sbr.rel (0) target = $region53
    $region52: #{tpu_custom_call.1} parent=1 // pred_region
      %421 = dma.done [#allocation5], 128
    $region53: #{tpu_custom_call.1} parent=1 // pred_fallthru
      _
    %422 = vsyncpa [#allocation3], 1
    %423 = vsyncpa [#allocation5], 1

</llo_original>
